<compile_context>
chip_gen: v7x
topology: tpu7x:2x2x1
jax: 0.10.0
libtpu: 0.0.40
codegen_flags: <defaults>
</compile_context>

<pallas_src>
import jax
import jax.numpy as jnp
from jax.experimental import pallas as pl
from jax.experimental.pallas import tpu as pltpu


# ----------------------------- Pallas kernel ------------------------------ #
def _mlp_kernel(x_ref, *refs):
    """Fused MLP forward for one batch tile (batch on the lane axis).

    refs = (w0, b0, w1, b1, ..., w_{L-1}, b_{L-1}, out_ref)
      x_ref : (d, tb)          f32
      w_l   : (out_l, in_l)    bf16 (torch-native layout)
      b_l   : (out_l, 1)       f32
      out   : (1, tb)          f32
    Hidden layers apply ReLU; the final (hidden -> 1) layer does not.
    """
    out_ref = refs[-1]
    wb = refs[:-1]
    n_layers = len(wb) // 2

    h = x_ref[...]  # (d, tb) f32
    for layer in range(n_layers):
        w = wb[2 * layer][...]        # (out, in) bf16
        b = wb[2 * layer + 1][...]    # (out, 1)  f32
        # bf16 x bf16 matmul on the MXU with f32 accumulation; N = tb (>=128).
        h = jnp.dot(w, h.astype(jnp.bfloat16),
                    preferred_element_type=jnp.float32) + b
        if layer < n_layers - 1:      # ReLU on hidden layers only (f32, VPU)
            h = jnp.maximum(h, 0.0)
    out_ref[...] = h                  # (1, tb) lane-dense store


# ------------------------------ JAX wrapper ------------------------------- #
def deep_nn_forward(x, weights, biases, *, block_b=128):
    """Runs the whole MLP inside one pallas_call, tiled over the batch axis.

    x       : (B, d) float32
    weights : list of (out, in) bf16 arrays (torch-native layout)
    biases  : list of (out, 1) float32 arrays
    returns : (B,) float32   (matches torch `.squeeze()` for B > 1)
    """
    B, d = x.shape
    # Pad the batch up to a multiple of the lane tile so blocks are 128-aligned.
    B_pad = ((B + block_b - 1) // block_b) * block_b

    xt = x.T  # (d, B): batch on the lane axis
    if B_pad != B:
        xt = jnp.pad(xt, ((0, 0), (0, B_pad - B)))

    grid = (B_pad // block_b,)

    in_specs = [pl.BlockSpec((d, block_b), lambda i: (0, i))]
    flat_params = []
    flops = 0
    param_bytes = 0
    for w, b in zip(weights, biases):
        # Params are tiny and grid-invariant: full tensors resident in VMEM.
        # TODO(synk): when hidden_size is scaled up, add
        #   pipeline_mode=pl.Buffered(1) here to avoid 2x VMEM residency.
        in_specs.append(pl.BlockSpec(w.shape, lambda i: (0, 0)))
        in_specs.append(pl.BlockSpec(b.shape, lambda i: (0, 0)))
        flat_params.extend([w, b])
        flops += 2 * w.shape[0] * w.shape[1] * B_pad
        param_bytes += w.size * w.dtype.itemsize + b.size * b.dtype.itemsize

    bytes_accessed = (xt.size * xt.dtype.itemsize
                      + param_bytes
                      + B_pad * 4)  # output (1, B_pad) f32

    out = pl.pallas_call(
        _mlp_kernel,
        out_shape=jax.ShapeDtypeStruct((1, B_pad), jnp.float32),
        grid=grid,
        in_specs=in_specs,
        out_specs=pl.BlockSpec((1, block_b), lambda i: (0, i)),
        compiler_params=pltpu.CompilerParams(
            dimension_semantics=("parallel",),
            vmem_limit_bytes=32 * 1024 * 1024,
        ),
        cost_estimate=pl.CostEstimate(
            flops=flops, transcendentals=0, bytes_accessed=bytes_accessed),
    )(xt, *flat_params)

    # torch's .squeeze(): (B, 1) -> (B,); drop the batch padding.
    return out[0, :B]


# --------------------------- Parameter creation ---------------------------- #
def init_deep_nn_params(key, d, hidden_size, depth, mode="special",
                        param_dtype=jnp.bfloat16):
    """Re-implementation of DeepNN.__init__ weight init (mode='special').

    Weights are stored torch-native as (out, in) (cast to `param_dtype` for the
    MXU); biases are (out, 1) float32 columns (broadcast over the lane/batch
    axis inside the kernel).
    """
    assert mode == "special"
    weights, biases = [], []
    prev_dim = d
    for _ in range(depth):
        key, sub = jax.random.split(key)
        gain = jnp.sqrt(2.0)                      # calculate_gain('relu')
        std = gain / jnp.sqrt(float(prev_dim))
        w = std * jax.random.normal(sub, (hidden_size, prev_dim), jnp.float32)
        weights.append(w.astype(param_dtype))
        biases.append(jnp.zeros((hidden_size, 1), jnp.float32))
        prev_dim = hidden_size
    key, sub = jax.random.split(key)
    w_final = 0.01 * jax.random.normal(sub, (1, prev_dim), jnp.float32)
    weights.append(w_final.astype(param_dtype))
    biases.append(jnp.zeros((1, 1), jnp.float32))
    return weights, biases


# Pure-JAX f32 reference (uses the same bf16-quantized weight values).
def _reference_forward(x, weights, biases):
    h = x.T.astype(jnp.float32)
    n = len(weights)
    for i, (w, b) in enumerate(zip(weights, biases)):
        h = jnp.dot(w.astype(jnp.float32), h) + b
        if i < n - 1:
            h = jnp.maximum(h, 0.0)
    return h[0]


# --------------------------------- Main ------------------------------------ #
if __name__ == "__main__":
    d = 16
    hidden_size = 32
    depth = 3
    batch = 256          # two 128-wide lane tiles -> grid of 2 "parallel" steps
    block_b = 128

    key = jax.random.PRNGKey(0)
    key, xkey = jax.random.split(key)
    x = jax.random.normal(xkey, (batch, d), jnp.float32)

    weights, biases = init_deep_nn_params(key, d, hidden_size, depth,
                                          mode="special")

    out = deep_nn_forward(x, weights, biases, block_b=block_b)
    out = jax.block_until_ready(out)

    ref = _reference_forward(x, weights, biases)
    assert out.shape == (batch,), out.shape
    # bf16 matmuls inside the kernel vs f32 reference: loosened tolerance.
    assert jnp.allclose(out, ref, atol=5e-3, rtol=5e-2), (
        float(jnp.max(jnp.abs(out - ref))))

    print("KERNEL_OK")
</pallas_src>

<mosaic_0001>
module attributes {stable_mosaic.version = 11 : i64} {
  func.func @_mlp_kernel(%arg0: i32, %arg1: memref<16x128xf32, #tpu.memory_space<vmem>>, %arg2: memref<32x16xbf16, #tpu.memory_space<vmem>>, %arg3: memref<32x1xf32, #tpu.memory_space<vmem>>, %arg4: memref<32x32xbf16, #tpu.memory_space<vmem>>, %arg5: memref<32x1xf32, #tpu.memory_space<vmem>>, %arg6: memref<32x32xbf16, #tpu.memory_space<vmem>>, %arg7: memref<32x1xf32, #tpu.memory_space<vmem>>, %arg8: memref<1x32xbf16, #tpu.memory_space<vmem>>, %arg9: memref<1x1xf32, #tpu.memory_space<vmem>>, %arg10: memref<1x128xf32, #tpu.memory_space<vmem>>) attributes {dimension_semantics = [#tpu.dimension_semantics<parallel>], iteration_bounds = array<i64: 2>, scalar_prefetch = 0 : i64, scratch_operands = 0 : i64, tpu.core_type = #tpu.core_type<tc>, window_params = [{transform_indices = @transform_0, window_bounds = array<i64: 16, 128>}, {pipeline_mode = #tpu.pipeline_mode<synchronous>, transform_indices = @transform_1, window_bounds = array<i64: 32, 16>}, {pipeline_mode = #tpu.pipeline_mode<synchronous>, transform_indices = @transform_2, window_bounds = array<i64: 32, 1>}, {pipeline_mode = #tpu.pipeline_mode<synchronous>, transform_indices = @transform_3, window_bounds = array<i64: 32, 32>}, {pipeline_mode = #tpu.pipeline_mode<synchronous>, transform_indices = @transform_4, window_bounds = array<i64: 32, 1>}, {pipeline_mode = #tpu.pipeline_mode<synchronous>, transform_indices = @transform_5, window_bounds = array<i64: 32, 32>}, {pipeline_mode = #tpu.pipeline_mode<synchronous>, transform_indices = @transform_6, window_bounds = array<i64: 32, 1>}, {pipeline_mode = #tpu.pipeline_mode<synchronous>, transform_indices = @transform_7, window_bounds = array<i64: 1, 32>}, {pipeline_mode = #tpu.pipeline_mode<synchronous>, transform_indices = @transform_8, window_bounds = array<i64: 1, 1>}, {transform_indices = @transform_9, window_bounds = array<i64: 1, 128>}]} {
    %c0 = arith.constant 0 : index
    %c0_0 = arith.constant 0 : index
    %0 = vector.load %arg1[%c0, %c0_0] : memref<16x128xf32, #tpu.memory_space<vmem>>, vector<16x128xf32>
    %c0_1 = arith.constant 0 : index
    %c0_2 = arith.constant 0 : index
    %1 = vector.load %arg2[%c0_1, %c0_2] : memref<32x16xbf16, #tpu.memory_space<vmem>>, vector<32x16xbf16>
    %c0_3 = arith.constant 0 : index
    %c0_4 = arith.constant 0 : index
    %2 = vector.load %arg3[%c0_3, %c0_4] : memref<32x1xf32, #tpu.memory_space<vmem>>, vector<32x1xf32>
    %3 = arith.truncf %0 : vector<16x128xf32> to vector<16x128xbf16>
    %cst = arith.constant dense<0.000000e+00> : vector<32x128xf32>
    %4 = tpu.matmul %1, %3, %cst {dimension_numbers = #tpu.dot_dimension_numbers<[1], [0], [0], [1], [0, 0, 1, 1], [], []>} : vector<32x16xbf16>, vector<16x128xbf16>, vector<32x128xf32> -> vector<32x128xf32>
    %5 = vector.broadcast %2 : vector<32x1xf32> to vector<32x128xf32>
    %6 = arith.addf %4, %5 : vector<32x128xf32>
    %cst_5 = arith.constant 0.000000e+00 : f32
    %7 = vector.broadcast %cst_5 : f32 to vector<32x128xf32>
    %8 = arith.maximumf %6, %7 : vector<32x128xf32>
    %c0_6 = arith.constant 0 : index
    %c0_7 = arith.constant 0 : index
    %9 = vector.load %arg4[%c0_6, %c0_7] : memref<32x32xbf16, #tpu.memory_space<vmem>>, vector<32x32xbf16>
    %c0_8 = arith.constant 0 : index
    %c0_9 = arith.constant 0 : index
    %10 = vector.load %arg5[%c0_8, %c0_9] : memref<32x1xf32, #tpu.memory_space<vmem>>, vector<32x1xf32>
    %11 = arith.truncf %8 : vector<32x128xf32> to vector<32x128xbf16>
    %cst_10 = arith.constant dense<0.000000e+00> : vector<32x128xf32>
    %12 = tpu.matmul %9, %11, %cst_10 {dimension_numbers = #tpu.dot_dimension_numbers<[1], [0], [0], [1], [0, 0, 1, 1], [], []>} : vector<32x32xbf16>, vector<32x128xbf16>, vector<32x128xf32> -> vector<32x128xf32>
    %13 = vector.broadcast %10 : vector<32x1xf32> to vector<32x128xf32>
    %14 = arith.addf %12, %13 : vector<32x128xf32>
    %cst_11 = arith.constant 0.000000e+00 : f32
    %15 = vector.broadcast %cst_11 : f32 to vector<32x128xf32>
    %16 = arith.maximumf %14, %15 : vector<32x128xf32>
    %c0_12 = arith.constant 0 : index
    %c0_13 = arith.constant 0 : index
    %17 = vector.load %arg6[%c0_12, %c0_13] : memref<32x32xbf16, #tpu.memory_space<vmem>>, vector<32x32xbf16>
    %c0_14 = arith.constant 0 : index
    %c0_15 = arith.constant 0 : index
    %18 = vector.load %arg7[%c0_14, %c0_15] : memref<32x1xf32, #tpu.memory_space<vmem>>, vector<32x1xf32>
    %19 = arith.truncf %16 : vector<32x128xf32> to vector<32x128xbf16>
    %cst_16 = arith.constant dense<0.000000e+00> : vector<32x128xf32>
    %20 = tpu.matmul %17, %19, %cst_16 {dimension_numbers = #tpu.dot_dimension_numbers<[1], [0], [0], [1], [0, 0, 1, 1], [], []>} : vector<32x32xbf16>, vector<32x128xbf16>, vector<32x128xf32> -> vector<32x128xf32>
    %21 = vector.broadcast %18 : vector<32x1xf32> to vector<32x128xf32>
    %22 = arith.addf %20, %21 : vector<32x128xf32>
    %cst_17 = arith.constant 0.000000e+00 : f32
    %23 = vector.broadcast %cst_17 : f32 to vector<32x128xf32>
    %24 = arith.maximumf %22, %23 : vector<32x128xf32>
    %c0_18 = arith.constant 0 : index
    %c0_19 = arith.constant 0 : index
    %25 = vector.load %arg8[%c0_18, %c0_19] : memref<1x32xbf16, #tpu.memory_space<vmem>>, vector<1x32xbf16>
    %c0_20 = arith.constant 0 : index
    %c0_21 = arith.constant 0 : index
    %26 = vector.load %arg9[%c0_20, %c0_21] : memref<1x1xf32, #tpu.memory_space<vmem>>, vector<1x1xf32>
    %27 = arith.truncf %24 : vector<32x128xf32> to vector<32x128xbf16>
    %cst_22 = arith.constant dense<0.000000e+00> : vector<1x128xf32>
    %28 = tpu.matmul %25, %27, %cst_22 {dimension_numbers = #tpu.dot_dimension_numbers<[1], [0], [0], [1], [0, 0, 1, 1], [], []>} : vector<1x32xbf16>, vector<32x128xbf16>, vector<1x128xf32> -> vector<1x128xf32>
    %29 = vector.broadcast %26 : vector<1x1xf32> to vector<1x128xf32>
    %30 = arith.addf %28, %29 : vector<1x128xf32>
    %c0_23 = arith.constant 0 : index
    %c0_24 = arith.constant 0 : index
    %31 = vector.load %arg10[%c0_23, %c0_24] : memref<1x128xf32, #tpu.memory_space<vmem>>, vector<1x128xf32>
    tpu.vector_store %arg10[%c0_23, %c0_24], %30 {strides = array<i32>} : memref<1x128xf32, #tpu.memory_space<vmem>>, vector<1x128xf32>,
    return
  }
  func.func @transform_0(%arg0: i32) -> (i32, i32) {
    %c0_i32 = arith.constant 0 : i32
    %c0_i32_0 = arith.constant 0 : i32
    return %c0_i32, %arg0 : i32, i32
  }
  func.func @transform_1(%arg0: i32) -> (i32, i32) {
    %c0_i32 = arith.constant 0 : i32
    %c0_i32_0 = arith.constant 0 : i32
    %c0_i32_1 = arith.constant 0 : i32
    return %c0_i32, %c0_i32_0 : i32, i32
  }
  func.func @transform_2(%arg0: i32) -> (i32, i32) {
    %c0_i32 = arith.constant 0 : i32
    %c0_i32_0 = arith.constant 0 : i32
    %c0_i32_1 = arith.constant 0 : i32
    return %c0_i32, %c0_i32_0 : i32, i32
  }
  func.func @transform_3(%arg0: i32) -> (i32, i32) {
    %c0_i32 = arith.constant 0 : i32
    %c0_i32_0 = arith.constant 0 : i32
    %c0_i32_1 = arith.constant 0 : i32
    return %c0_i32, %c0_i32_0 : i32, i32
  }
  func.func @transform_4(%arg0: i32) -> (i32, i32) {
    %c0_i32 = arith.constant 0 : i32
    %c0_i32_0 = arith.constant 0 : i32
    %c0_i32_1 = arith.constant 0 : i32
    return %c0_i32, %c0_i32_0 : i32, i32
  }
  func.func @transform_5(%arg0: i32) -> (i32, i32) {
    %c0_i32 = arith.constant 0 : i32
    %c0_i32_0 = arith.constant 0 : i32
    %c0_i32_1 = arith.constant 0 : i32
    return %c0_i32, %c0_i32_0 : i32, i32
  }
  func.func @transform_6(%arg0: i32) -> (i32, i32) {
    %c0_i32 = arith.constant 0 : i32
    %c0_i32_0 = arith.constant 0 : i32
    %c0_i32_1 = arith.constant 0 : i32
    return %c0_i32, %c0_i32_0 : i32, i32
  }
  func.func @transform_7(%arg0: i32) -> (i32, i32) {
    %c0_i32 = arith.constant 0 : i32
    %c0_i32_0 = arith.constant 0 : i32
    %c0_i32_1 = arith.constant 0 : i32
    return %c0_i32, %c0_i32_0 : i32, i32
  }
  func.func @transform_8(%arg0: i32) -> (i32, i32) {
    %c0_i32 = arith.constant 0 : i32
    %c0_i32_0 = arith.constant 0 : i32
    %c0_i32_1 = arith.constant 0 : i32
    return %c0_i32, %c0_i32_0 : i32, i32
  }
  func.func @transform_9(%arg0: i32) -> (i32, i32) {
    %c0_i32 = arith.constant 0 : i32
    %c0_i32_0 = arith.constant 0 : i32
    return %c0_i32, %arg0 : i32, i32
  }
}

</mosaic_0001>

<llo_original>
// kernel: tpu_custom_call.1
$region0: #{tpu_custom_call.1}
  #allocation0 [shape = 'u32[]', space=smem, size = 0x4, offset = 0x4, fixed_abs, tag = 'smem constant byte address 0x4 - core index']
  #allocation1 [shape = 'u32[144,128]{1,0:T(1,128)}', space=vmem, size = 0x12000, scoped, tag = 'internal scratch']
  #allocation2 [shape = 'f32[1,1]{1,0:T(1,128)S(1)}', space=vmem, size = 0x200, scoped, tag = 'scoped memory for tpu_custom_call.1']
  %s0 = inlined_call_operand.vmem [shape: f32[16,256], index: 0, kind: input, shape index: {}]
  %s1 = inlined_call_operand.vmem [shape: bf16[32,16], index: 1, kind: input, shape index: {}]
  %s2 = inlined_call_operand.vmem [shape: f32[32,1], index: 2, kind: input, shape index: {}]
  %s3 = inlined_call_operand.vmem [shape: bf16[32,32], index: 3, kind: input, shape index: {}]
  %s4 = inlined_call_operand.vmem [shape: f32[32,1], index: 4, kind: input, shape index: {}]
  %s5 = inlined_call_operand.vmem [shape: bf16[32,32], index: 5, kind: input, shape index: {}]
  %s6 = inlined_call_operand.vmem [shape: f32[32,1], index: 6, kind: input, shape index: {}]
  %s7 = inlined_call_operand.vmem [shape: bf16[1,32], index: 7, kind: input, shape index: {}]
  %s8 = inlined_call_operand.<no memory space> [shape: f32[1,1], index: 8, kind: input, shape index: {}]
  %s9 = inlined_call_operand.hbm [shape: f32[1,256], index: 9, kind: output, shape index: {}]
  %s10 = sld [smem:[#allocation0]]
  $region107: #{tpu_custom_call.1} parent=0
    _
  %s12 = ssub.s32 1, %s10
  %s13 = scalar_select 0, %s12, %s10
  %v14 = vstv %s8
  %15 = vst [vmem:[#allocation2] sm:$0x1] %v14
  $region1: #{tpu_custom_call.1} parent=0
    #allocation3 [shape = 'u8[16384]{0}', space=vmem, size = 0x4000, scoped, tag = 'input window, operand 0']
    #allocation4 [shape = 'u8[1024]{0}', space=vmem, size = 0x400, scoped, tag = 'output window, operand 0']
    #allocation5 [shape = 's32[2]{0}', space=sflag, size = 0x8, scoped, tag = 'scoped memory for tpu_custom_call.1']
    %16 = vsyncpa [#allocation5], 0
    %s17 = scalar_lea.sflag [#allocation5], 1
    %18 = vsyncpa %s17, 0
    loop: start=0, step=1, limit=4
    $region2: #{tpu_custom_call.1} parent=1 // loop_pre_header
      _
    $region3: #{tpu_custom_call.1} parent=1 // loop_header
      %s20 = sphi 0, %s24
      %p21 = scmp.ge.s32.totalorder %s20, 4
      %s30 = sphi 0, %s32
      %s33 = sphi 0, %s30
      %s34 = sphi 0, %s33
      %s50 = sphi 0, %s34
      %s54 = sphi 0, %s54
      %s56 = sphi 0, %s54
      %s57 = sphi 0, %s56
      %s71 = sphi 0, %s57
      %s75 = sphi 0, %s75
      %s77 = sphi 0, %s75
      %s78 = sphi 0, %s77
      %s92 = sphi 0, %s78
      %s96 = sphi 0, %s96
      %s98 = sphi 0, %s96
      %s99 = sphi 0, %s98
      %s113 = sphi 0, %s99
      %s117 = sphi 0, %s117
      %s119 = sphi 0, %s117
      %s120 = sphi 0, %s119
      %s134 = sphi 0, %s120
      %s138 = sphi 0, %s138
      %s140 = sphi 0, %s138
      %s141 = sphi 0, %s140
      %s155 = sphi 0, %s141
      %s159 = sphi 0, %s159
      %s161 = sphi 0, %s159
      %s162 = sphi 0, %s161
      %s176 = sphi 0, %s162
      %s180 = sphi 0, %s180
      %s182 = sphi 0, %s180
      %s183 = sphi 0, %s182
      %s197 = sphi 0, %s183
      %s201 = sphi 0, %s201
      %s203 = sphi 0, %s201
      %s204 = sphi 0, %s203
      %s218 = sphi 0, %s204
      %s224 = sphi 0, %s226
      %s227 = sphi 0, %s224
      %s228 = sphi 0, %s227
      %s244 = sphi 0, %s228
    $region4: #{tpu_custom_call.1} parent=1 // loop_header_branch
      %23 = sbr.rel (%p21) target = $region8
    $region5: #{tpu_custom_call.1} parent=1 // loop_body
      %s25 = ssub.s32 %s20, 1
      %s26 = ssub.s32 %s20, 2
      %s27 = sadd.s32 %s20, 1
      %s28 = ssub.s32 %s20, %s27
      %p29 = scmp.eq.s32.totalorder %s28, 0
      %s31 = sadd.s32 %s30, 1
      %s32 = scalar_select %p29, %s30, %s31
      %p35 = pneg %p29
      %p36 = scmp.eq.s32.totalorder %s20, 1
      %p37 = por %p35, %p36
      %p38 = scmp.ne.s32.totalorder %s30, %s33
      %p39 = scmp.eq.s32.totalorder %s20, 0
      %p40 = por %p38, %p39
      %p41 = scmp.ne.s32.totalorder %s30, %s33
      %p42 = scmp.eq.s32.totalorder %s25, 1
      %p43 = por %p41, %p42
      %p44 = scmp.ne.s32.totalorder %s33, %s34
      %p45 = scmp.eq.s32.totalorder %s25, 0
      %p46 = por %p44, %p45
      %p47 = scmp.ne.s32.totalorder %s33, %s34
      %p48 = scmp.eq.s32.totalorder %s26, 1
      %p49 = por %p47, %p48
      %p51 = scmp.ne.s32.totalorder %s34, %s50
      %p52 = scmp.eq.s32.totalorder %s26, 0
      %p53 = por %p51, %p52
      %s55 = sadd.s32 %s54, 1
      %p58 = scmp.eq.s32.totalorder %s20, 1
      %p59 = scmp.ne.s32.totalorder %s54, %s56
      %p60 = scmp.eq.s32.totalorder %s20, 0
      %p61 = por %p59, %p60
      %p62 = scmp.ne.s32.totalorder %s54, %s56
      %p63 = scmp.eq.s32.totalorder %s25, 1
      %p64 = por %p62, %p63
      %p65 = scmp.ne.s32.totalorder %s56, %s57
      %p66 = scmp.eq.s32.totalorder %s25, 0
      %p67 = por %p65, %p66
      %p68 = scmp.ne.s32.totalorder %s56, %s57
      %p69 = scmp.eq.s32.totalorder %s26, 1
      %p70 = por %p68, %p69
      %p72 = scmp.ne.s32.totalorder %s57, %s71
      %p73 = scmp.eq.s32.totalorder %s26, 0
      %p74 = por %p72, %p73
      %s76 = sadd.s32 %s75, 1
      %p79 = scmp.eq.s32.totalorder %s20, 1
      %p80 = scmp.ne.s32.totalorder %s75, %s77
      %p81 = scmp.eq.s32.totalorder %s20, 0
      %p82 = por %p80, %p81
      %p83 = scmp.ne.s32.totalorder %s75, %s77
      %p84 = scmp.eq.s32.totalorder %s25, 1
      %p85 = por %p83, %p84
      %p86 = scmp.ne.s32.totalorder %s77, %s78
      %p87 = scmp.eq.s32.totalorder %s25, 0
      %p88 = por %p86, %p87
      %p89 = scmp.ne.s32.totalorder %s77, %s78
      %p90 = scmp.eq.s32.totalorder %s26, 1
      %p91 = por %p89, %p90
      %p93 = scmp.ne.s32.totalorder %s78, %s92
      %p94 = scmp.eq.s32.totalorder %s26, 0
      %p95 = por %p93, %p94
      %s97 = sadd.s32 %s96, 1
      %p100 = scmp.eq.s32.totalorder %s20, 1
      %p101 = scmp.ne.s32.totalorder %s96, %s98
      %p102 = scmp.eq.s32.totalorder %s20, 0
      %p103 = por %p101, %p102
      %p104 = scmp.ne.s32.totalorder %s96, %s98
      %p105 = scmp.eq.s32.totalorder %s25, 1
      %p106 = por %p104, %p105
      %p107 = scmp.ne.s32.totalorder %s98, %s99
      %p108 = scmp.eq.s32.totalorder %s25, 0
      %p109 = por %p107, %p108
      %p110 = scmp.ne.s32.totalorder %s98, %s99
      %p111 = scmp.eq.s32.totalorder %s26, 1
      %p112 = por %p110, %p111
      %p114 = scmp.ne.s32.totalorder %s99, %s113
      %p115 = scmp.eq.s32.totalorder %s26, 0
      %p116 = por %p114, %p115
      %s118 = sadd.s32 %s117, 1
      %p121 = scmp.eq.s32.totalorder %s20, 1
      %p122 = scmp.ne.s32.totalorder %s117, %s119
      %p123 = scmp.eq.s32.totalorder %s20, 0
      %p124 = por %p122, %p123
      %p125 = scmp.ne.s32.totalorder %s117, %s119
      %p126 = scmp.eq.s32.totalorder %s25, 1
      %p127 = por %p125, %p126
      %p128 = scmp.ne.s32.totalorder %s119, %s120
      %p129 = scmp.eq.s32.totalorder %s25, 0
      %p130 = por %p128, %p129
      %p131 = scmp.ne.s32.totalorder %s119, %s120
      %p132 = scmp.eq.s32.totalorder %s26, 1
      %p133 = por %p131, %p132
      %p135 = scmp.ne.s32.totalorder %s120, %s134
      %p136 = scmp.eq.s32.totalorder %s26, 0
      %p137 = por %p135, %p136
      %s139 = sadd.s32 %s138, 1
      %p142 = scmp.eq.s32.totalorder %s20, 1
      %p143 = scmp.ne.s32.totalorder %s138, %s140
      %p144 = scmp.eq.s32.totalorder %s20, 0
      %p145 = por %p143, %p144
      %p146 = scmp.ne.s32.totalorder %s138, %s140
      %p147 = scmp.eq.s32.totalorder %s25, 1
      %p148 = por %p146, %p147
      %p149 = scmp.ne.s32.totalorder %s140, %s141
      %p150 = scmp.eq.s32.totalorder %s25, 0
      %p151 = por %p149, %p150
      %p152 = scmp.ne.s32.totalorder %s140, %s141
      %p153 = scmp.eq.s32.totalorder %s26, 1
      %p154 = por %p152, %p153
      %p156 = scmp.ne.s32.totalorder %s141, %s155
      %p157 = scmp.eq.s32.totalorder %s26, 0
      %p158 = por %p156, %p157
      %s160 = sadd.s32 %s159, 1
      %p163 = scmp.eq.s32.totalorder %s20, 1
      %p164 = scmp.ne.s32.totalorder %s159, %s161
      %p165 = scmp.eq.s32.totalorder %s20, 0
      %p166 = por %p164, %p165
      %p167 = scmp.ne.s32.totalorder %s159, %s161
      %p168 = scmp.eq.s32.totalorder %s25, 1
      %p169 = por %p167, %p168
      %p170 = scmp.ne.s32.totalorder %s161, %s162
      %p171 = scmp.eq.s32.totalorder %s25, 0
      %p172 = por %p170, %p171
      %p173 = scmp.ne.s32.totalorder %s161, %s162
      %p174 = scmp.eq.s32.totalorder %s26, 1
      %p175 = por %p173, %p174
      %p177 = scmp.ne.s32.totalorder %s162, %s176
      %p178 = scmp.eq.s32.totalorder %s26, 0
      %p179 = por %p177, %p178
      %s181 = sadd.s32 %s180, 1
      %p184 = scmp.eq.s32.totalorder %s20, 1
      %p185 = scmp.ne.s32.totalorder %s180, %s182
      %p186 = scmp.eq.s32.totalorder %s20, 0
      %p187 = por %p185, %p186
      %p188 = scmp.ne.s32.totalorder %s180, %s182
      %p189 = scmp.eq.s32.totalorder %s25, 1
      %p190 = por %p188, %p189
      %p191 = scmp.ne.s32.totalorder %s182, %s183
      %p192 = scmp.eq.s32.totalorder %s25, 0
      %p193 = por %p191, %p192
      %p194 = scmp.ne.s32.totalorder %s182, %s183
      %p195 = scmp.eq.s32.totalorder %s26, 1
      %p196 = por %p194, %p195
      %p198 = scmp.ne.s32.totalorder %s183, %s197
      %p199 = scmp.eq.s32.totalorder %s26, 0
      %p200 = por %p198, %p199
      %s202 = sadd.s32 %s201, 1
      %p205 = scmp.eq.s32.totalorder %s20, 1
      %p206 = scmp.ne.s32.totalorder %s201, %s203
      %p207 = scmp.eq.s32.totalorder %s20, 0
      %p208 = por %p206, %p207
      %p209 = scmp.ne.s32.totalorder %s201, %s203
      %p210 = scmp.eq.s32.totalorder %s25, 1
      %p211 = por %p209, %p210
      %p212 = scmp.ne.s32.totalorder %s203, %s204
      %p213 = scmp.eq.s32.totalorder %s25, 0
      %p214 = por %p212, %p213
      %p215 = scmp.ne.s32.totalorder %s203, %s204
      %p216 = scmp.eq.s32.totalorder %s26, 1
      %p217 = por %p215, %p216
      %p219 = scmp.ne.s32.totalorder %s204, %s218
      %p220 = scmp.eq.s32.totalorder %s26, 0
      %p221 = por %p219, %p220
      %s222 = ssub.s32 %s20, %s27
      %p223 = scmp.eq.s32.totalorder %s222, 0
      %s225 = sadd.s32 %s224, 1
      %s226 = scalar_select %p223, %s224, %s225
      %p229 = pneg %p223
      %p230 = scmp.eq.s32.totalorder %s20, 1
      %p231 = por %p229, %p230
      %p232 = scmp.ne.s32.totalorder %s224, %s227
      %p233 = scmp.eq.s32.totalorder %s20, 0
      %p234 = por %p232, %p233
      %p235 = scmp.ne.s32.totalorder %s224, %s227
      %p236 = scmp.eq.s32.totalorder %s25, 1
      %p237 = por %p235, %p236
      %p238 = scmp.ne.s32.totalorder %s227, %s228
      %p239 = scmp.eq.s32.totalorder %s25, 0
      %p240 = por %p238, %p239
      %p241 = scmp.ne.s32.totalorder %s227, %s228
      %p242 = scmp.eq.s32.totalorder %s26, 1
      %p243 = por %p241, %p242
      %p245 = scmp.ne.s32.totalorder %s228, %s244
      %p246 = scmp.eq.s32.totalorder %s26, 0
      %p247 = por %p245, %p246
      %p248 = scmp.le.s32.totalorder 1, %s20
      %p249 = scmp.lt.s32.totalorder %s20, 3
      %p250 = pnand %p248, %p249
      %p251 = pneg %p250
      // Predicated region
      $region9: #{tpu_custom_call.1} parent=5 // pred_check
        _
      $region10: #{tpu_custom_call.1} parent=5 // pred_check_branch
        %253 = sbr.rel (%p250) target = $region12
      $region11: #{tpu_custom_call.1} parent=5 // pred_region
        %s254 = ssub.s32 %s20, 1
        // Predicated region
        $region13: #{tpu_custom_call.1} parent=11 // pred_check
          %p255 = pneg %p67
        $region14: #{tpu_custom_call.1} parent=11 // pred_check_branch
          %257 = sbr.rel (%p255) target = $region16
        $region15: #{tpu_custom_call.1} parent=11 // pred_region
          _
        $region16: #{tpu_custom_call.1} parent=11 // pred_fallthru
          _
        // Predicated region
        $region17: #{tpu_custom_call.1} parent=11 // pred_check
          %p258 = pneg %p88
        $region18: #{tpu_custom_call.1} parent=11 // pred_check_branch
          %260 = sbr.rel (%p258) target = $region20
        $region19: #{tpu_custom_call.1} parent=11 // pred_region
          _
        $region20: #{tpu_custom_call.1} parent=11 // pred_fallthru
          _
        // Predicated region
        $region21: #{tpu_custom_call.1} parent=11 // pred_check
          %p261 = pneg %p109
        $region22: #{tpu_custom_call.1} parent=11 // pred_check_branch
          %263 = sbr.rel (%p261) target = $region24
        $region23: #{tpu_custom_call.1} parent=11 // pred_region
          _
        $region24: #{tpu_custom_call.1} parent=11 // pred_fallthru
          _
        // Predicated region
        $region25: #{tpu_custom_call.1} parent=11 // pred_check
          %p264 = pneg %p130
        $region26: #{tpu_custom_call.1} parent=11 // pred_check_branch
          %266 = sbr.rel (%p264) target = $region28
        $region27: #{tpu_custom_call.1} parent=11 // pred_region
          _
        $region28: #{tpu_custom_call.1} parent=11 // pred_fallthru
          _
        // Predicated region
        $region29: #{tpu_custom_call.1} parent=11 // pred_check
          %p267 = pneg %p151
        $region30: #{tpu_custom_call.1} parent=11 // pred_check_branch
          %269 = sbr.rel (%p267) target = $region32
        $region31: #{tpu_custom_call.1} parent=11 // pred_region
          _
        $region32: #{tpu_custom_call.1} parent=11 // pred_fallthru
          _
        // Predicated region
        $region33: #{tpu_custom_call.1} parent=11 // pred_check
          %p270 = pneg %p172
        $region34: #{tpu_custom_call.1} parent=11 // pred_check_branch
          %272 = sbr.rel (%p270) target = $region36
        $region35: #{tpu_custom_call.1} parent=11 // pred_region
          _
        $region36: #{tpu_custom_call.1} parent=11 // pred_fallthru
          _
        // Predicated region
        $region37: #{tpu_custom_call.1} parent=11 // pred_check
          %p273 = pneg %p193
        $region38: #{tpu_custom_call.1} parent=11 // pred_check_branch
          %275 = sbr.rel (%p273) target = $region40
        $region39: #{tpu_custom_call.1} parent=11 // pred_region
          _
        $region40: #{tpu_custom_call.1} parent=11 // pred_fallthru
          _
        // Predicated region
        $region41: #{tpu_custom_call.1} parent=11 // pred_check
          %p276 = pneg %p214
        $region42: #{tpu_custom_call.1} parent=11 // pred_check_branch
          %278 = sbr.rel (%p276) target = $region44
        $region43: #{tpu_custom_call.1} parent=11 // pred_region
          _
        $region44: #{tpu_custom_call.1} parent=11 // pred_fallthru
          _
      $region12: #{tpu_custom_call.1} parent=5 // pred_fallthru
        _
      %p279 = scmp.lt.s32.totalorder %s20, 2
      // Predicated region
      $region45: #{tpu_custom_call.1} parent=5 // pred_check
        %p280 = pneg %p279
      $region46: #{tpu_custom_call.1} parent=5 // pred_check_branch
        %282 = sbr.rel (%p280) target = $region48
      $region47: #{tpu_custom_call.1} parent=5 // pred_region
        // Predicated region
        $region49: #{tpu_custom_call.1} parent=47 // pred_check
          %p283 = pneg %p40
        $region50: #{tpu_custom_call.1} parent=47 // pred_check_branch
          %285 = sbr.rel (%p283) target = $region52
        $region51: #{tpu_custom_call.1} parent=47 // pred_region
          %s286 = sand.u32 %s30, 1
          %s287 = sand.u32 %s30, 1
          %s288 = smul.addr %s287, 16
          %s289 = scalar_lea.vmem [#allocation3], %s288
          %s290 = smul.addr %s20, 8
          %s291 = scalar_lea.vmem %s0, %s290
          // Predicated region
          $region53: #{tpu_custom_call.1} parent=51 // pred_check
            _
          $region54: #{tpu_custom_call.1} parent=51 // pred_check_branch
            %293 = sbr.rel (0) target = $region56
          $region55: #{tpu_custom_call.1} parent=51 // pred_region
            // Predicated region
            $region57: #{tpu_custom_call.1} parent=55 // pred_check
              _
            $region58: #{tpu_custom_call.1} parent=55 // pred_check_branch
              %295 = sbr.rel (0) target = $region60
            $region59: #{tpu_custom_call.1} parent=55 // pred_region
              // Predicated region
              $region72: #{tpu_custom_call.1} parent=59 // pred_check
                _
              $region73: #{tpu_custom_call.1} parent=59 // pred_check_branch
                %312 = sbr.rel (0) target = $region75
              $region74: #{tpu_custom_call.1} parent=59 // pred_region
                loop: start=0, step=1, limit=1
                $region76: #{tpu_custom_call.1} parent=74 // loop_pre_header
                  _
                $region77: #{tpu_custom_call.1} parent=74 // loop_header
                  %s314 = sphi 0, %s318
                  %p315 = scmp.ge.s32.totalorder %s314, 1
                  %s319 = sphi %s291, %s291
                  %s320 = sphi %s289, %s289
                $region78: #{tpu_custom_call.1} parent=74 // loop_header_branch
                  %317 = sbr.rel (%p315) target = $region82
                $region79: #{tpu_custom_call.1} parent=74 // loop_body
                  %v321 = vld [vmem:[%s319] sm:$0xff]
                  %322 = vst [vmem:[%s320] sm:$0xff] %v321
                  %v323 = vld [vmem:[%s319 + $0x10] sm:$0xff]
                  %324 = vst [vmem:[%s320 + $0x8] sm:$0xff] %v323
                $region80: #{tpu_custom_call.1} parent=74 // loop_footer
                  %s318 = sadd.s32 1, %s314
                $region81: #{tpu_custom_call.1} parent=74 // loop_footer_branch
                  %313 = sbr.rel target = $region77
                $region82: #{tpu_custom_call.1} parent=74 // loop_exit
                  _
              $region75: #{tpu_custom_call.1} parent=59 // pred_fallthru
                _
              // Predicated region
              $region83: #{tpu_custom_call.1} parent=59 // pred_check
                _
              $region84: #{tpu_custom_call.1} parent=59 // pred_check_branch
                %326 = sbr.rel target = $region86
              $region85: #{tpu_custom_call.1} parent=59 // pred_region
                _
              $region86: #{tpu_custom_call.1} parent=59 // pred_fallthru
                _
            $region60: #{tpu_custom_call.1} parent=55 // pred_fallthru
              _
            // Predicated region
            $region61: #{tpu_custom_call.1} parent=55 // pred_check
              _
            $region62: #{tpu_custom_call.1} parent=55 // pred_check_branch
              %297 = sbr.rel target = $region64
            $region63: #{tpu_custom_call.1} parent=55 // pred_region
              loop: start=0, step=1, limit=1
              $region65: #{tpu_custom_call.1} parent=63 // loop_pre_header
                _
              $region66: #{tpu_custom_call.1} parent=63 // loop_header
                %s300 = sphi 0, %s304
                %p301 = scmp.ge.s32.totalorder %s300, 1
                %s305 = sphi %s291, %s291
                %s306 = sphi %s289, %s289
              $region67: #{tpu_custom_call.1} parent=63 // loop_header_branch
                %303 = sbr.rel (%p301) target = $region71
              $region68: #{tpu_custom_call.1} parent=63 // loop_body
                %v307 = vld [vmem:[%s305] sm:$0xff]
                %308 = vst [vmem:[%s306] sm:$0xff] %v307
                %v309 = vld [vmem:[%s305 + $0x10] sm:$0xff]
                %310 = vst [vmem:[%s306 + $0x8] sm:$0xff] %v309
              $region69: #{tpu_custom_call.1} parent=63 // loop_footer
                %s304 = sadd.s32 1, %s300
              $region70: #{tpu_custom_call.1} parent=63 // loop_footer_branch
                %299 = sbr.rel target = $region66
              $region71: #{tpu_custom_call.1} parent=63 // loop_exit
                _
            $region64: #{tpu_custom_call.1} parent=55 // pred_fallthru
              _
          $region56: #{tpu_custom_call.1} parent=51 // pred_fallthru
            _
          %327 = vnop
        $region52: #{tpu_custom_call.1} parent=47 // pred_fallthru
          _
      $region48: #{tpu_custom_call.1} parent=5 // pred_fallthru
        _
      %p328 = scmp.le.s32.totalorder 1, %s20
      %p329 = scmp.lt.s32.totalorder %s20, 3
      %p330 = pnand %p328, %p329
      %p331 = pneg %p330
      // Predicated region
      $region87: #{tpu_custom_call.1} parent=5 // pred_check
        _
      $region88: #{tpu_custom_call.1} parent=5 // pred_check_branch
        %333 = sbr.rel (%p330) target = $region90
      $region89: #{tpu_custom_call.1} parent=5 // pred_region
        %s334 = ssub.s32 %s20, 1
        %s335 = sand.u32 %s33, 1
        %s336 = sand.u32 %s33, 1
        %s337 = smul.addr %s336, 16
        %s338 = scalar_lea.vmem [#allocation3], %s337
        // Predicated region
        $region91: #{tpu_custom_call.1} parent=89 // pred_check
          %p339 = pneg %p46
        $region92: #{tpu_custom_call.1} parent=89 // pred_check_branch
          %341 = sbr.rel (%p339) target = $region94
        $region93: #{tpu_custom_call.1} parent=89 // pred_region
          _
        $region94: #{tpu_custom_call.1} parent=89 // pred_fallthru
          _
        %s342 = sand.u32 %s33, 1
        %s343 = sand.u32 %s33, 1
        %s344 = smul.addr %s343, 16
        %s345 = scalar_lea.vmem [#allocation3], %s344
        %p346 = pneg %p46
        %p347 = pneg %p43
        %p348 = pneg %p67
        %p349 = pneg %p64
        %p350 = pneg %p88
        %p351 = pneg %p85
        %p352 = pneg %p109
        %p353 = pneg %p106
        %p354 = pneg %p130
        %p355 = pneg %p127
        %p356 = pneg %p151
        %p357 = pneg %p148
        %p358 = pneg %p172
        %p359 = pneg %p169
        %p360 = pneg %p193
        %p361 = pneg %p190
        %p362 = pneg %p214
        %p363 = pneg %p211
        %p364 = pneg %p240
        %p365 = pneg %p237
        %s366 = sand.u32 %s227, 1
        %s367 = scalar_lea.sflag [#allocation5], %s366
        %s368 = sand.u32 %s227, 1
        %s369 = scalar_lea.vmem [#allocation4], %s368
        %v371 = vld [vmem:[%s338] sm:$0xff]
        %v372 = vld [vmem:[%s338 + $0x8] sm:$0xff]
        %v373 = vld [vmem:[%s1] sm:$0xf]
        %v374 = vld [vmem:[%s1 + $0x4] sm:$0xf]
        %v375 = vld [vmem:[%s1 + $0x8] sm:$0xf]
        %v376 = vld [vmem:[%s1 + $0xc] sm:$0xf]
        %v377 = vld [vmem:[%s2] sm:$0xff]
        %v378 = vld [vmem:[%s2 + $0x8] sm:$0xff]
        %v379 = vld [vmem:[%s2 + $0x10] sm:$0xff]
        %v380 = vld [vmem:[%s2 + $0x18] sm:$0xff]
        %v381 = vpack.c.bf16 %v372, %v371
        %383 = vset.pattern.permute.xlu0 0
        %384 = vperm.xlu0 %383, %v377
        %v385 = vpop.permute.xlu0 %384
        %388 = vset.pattern.permute.xlu0 0
        %389 = vperm.xlu0 %388, %v378
        %v390 = vpop.permute.xlu0 %389
        %393 = vset.pattern.permute.xlu0 0
        %394 = vperm.xlu0 %393, %v379
        %v395 = vpop.permute.xlu0 %394
        %398 = vset.pattern.permute.xlu0 0
        %399 = vperm.xlu0 %398, %v380
        %v400 = vpop.permute.xlu0 %399
        %v406 = vunpack.c.l.b16 %v373
        %v407 = vunpack.c.l.b16 %v374
        %v408 = vunpack.c.l.b16 %v375
        %v409 = vunpack.c.l.b16 %v376
        %v410 = vpack.c.b16 %v407, %v406
        %v411 = vpack.c.b16 %v409, %v408
        %vm412 = vcmask 130048
        %v414 = vsel %vm412, %v410, 0
        %v417 = vsel %vm412, %v411, 0
        %419 = vmatprep.subr.bf16.mxu0 0
        %420 = vmatpush1.bf16.msra.mxu0 %v381
        %421 = vmatprep.subr.bf16.mxu0 0
        %422 = vmatpush1.bf16.msra.mxu0 0
        %423 = vmatprep.subr.bf16.mxu0 0
        %424 = vmatpush1.bf16.msra.mxu0 0
        %425 = vmatprep.subr.bf16.mxu0 0
        %426 = vmatpush1.bf16.msra.mxu0 0
        %427 = vmatprep.subr.bf16.mxu0 0
        %428 = vmatpush1.bf16.msra.mxu0 0
        %429 = vmatprep.subr.bf16.mxu0 0
        %430 = vmatpush1.bf16.msra.mxu0 0
        %431 = vmatprep.subr.bf16.mxu0 0
        %432 = vmatpush1.bf16.msra.mxu0 0
        %433 = vmatprep.subr.bf16.mxu0 0
        %434 = vmatpush1.bf16.msra.mxu0 0
        %435 = vmatprep.subr.bf16.mxu0 0
        %436 = vmatpush1.bf16.msra.mxu0 0
        %437 = vmatprep.subr.bf16.mxu0 0
        %438 = vmatpush1.bf16.msra.mxu0 0
        %439 = vmatprep.subr.bf16.mxu0 0
        %440 = vmatpush1.bf16.msra.mxu0 0
        %441 = vmatprep.subr.bf16.mxu0 0
        %442 = vmatpush1.bf16.msra.mxu0 0
        %443 = vmatprep.subr.bf16.mxu0 0
        %444 = vmatpush1.bf16.msra.mxu0 0
        %445 = vmatprep.subr.bf16.mxu0 0
        %446 = vmatpush1.bf16.msra.mxu0 0
        %447 = vmatprep.subr.bf16.mxu0 0
        %448 = vmatpush1.bf16.msra.mxu0 0
        %449 = vmatprep.subr.bf16.mxu0 0
        %450 = vmatpush1.bf16.msra.mxu0 0
        %451 = vmatprep.mubr.bf16.mxu0 0
        %452 = vmatmul.mubr.bf16.gmra.mrb[0].mxu0 %v414
        %v453 = vpop.f32.mrb[0].mxu0
        %v454 = vadd.f32 %v385, %v453
        %v455 = vpop.f32.mrb[0].mxu0
        %v456 = vpop.f32.mrb[0].mxu0
        %v457 = vadd.f32 %v390, %v456
        %v458 = vpop.f32.mrb[0].mxu0
        %459 = vmatprep.mubr.bf16.mxu0 0
        %460 = vmatmul.mubr.bf16.gmra.mrb[0].mxu0 %v417
        %v461 = vpop.f32.mrb[0].mxu0
        %v462 = vadd.f32 %v395, %v461
        %v463 = vpop.f32.mrb[0].mxu0
        %v464 = vpop.f32.mrb[0].mxu0
        %v465 = vadd.f32 %v400, %v464
        %v466 = vpop.f32.mrb[0].mxu0
        %467 = vdwg.mxu0
        %v468 = vmax.f32 %v454, 0.0
        %v469 = vmax.f32 %v457, 0.0
        %v470 = vmax.f32 %v462, 0.0
        %v471 = vmax.f32 %v465, 0.0
        %v472 = vld [vmem:[%s3] sm:$0xf]
        %v473 = vld [vmem:[%s3 + $0x4] sm:$0xf]
        %v474 = vld [vmem:[%s3 + $0x8] sm:$0xf]
        %v475 = vld [vmem:[%s3 + $0xc] sm:$0xf]
        %v476 = vld [vmem:[%s4] sm:$0xff]
        %v477 = vld [vmem:[%s4 + $0x8] sm:$0xff]
        %v478 = vld [vmem:[%s4 + $0x10] sm:$0xff]
        %v479 = vld [vmem:[%s4 + $0x18] sm:$0xff]
        %v480 = vpack.c.bf16 %v469, %v468
        %v481 = vpack.c.bf16 %v471, %v470
        %483 = vset.pattern.permute.xlu0 0
        %484 = vperm.xlu0 %483, %v476
        %v485 = vpop.permute.xlu0 %484
        %488 = vset.pattern.permute.xlu0 0
        %489 = vperm.xlu0 %488, %v477
        %v490 = vpop.permute.xlu0 %489
        %493 = vset.pattern.permute.xlu0 0
        %494 = vperm.xlu0 %493, %v478
        %v495 = vpop.permute.xlu0 %494
        %498 = vset.pattern.permute.xlu0 0
        %499 = vperm.xlu0 %498, %v479
        %v500 = vpop.permute.xlu0 %499
        %v506 = vunpack.c.l.b16 %v472
        %v507 = vunpack.c.l.b16 %v473
        %v508 = vunpack.c.l.b16 %v474
        %v509 = vunpack.c.l.b16 %v475
        %v510 = vpack.c.b16 %v507, %v506
        %v511 = vpack.c.b16 %v509, %v508
        %vm512 = vcmask 261120
        %v514 = vsel %vm512, %v510, 0
        %v517 = vsel %vm512, %v511, 0
        %519 = vmatprep.subr.bf16.mxu0 0
        %520 = vmatpush1.bf16.msra.mxu0 %v480
        %521 = vmatprep.subr.bf16.mxu0 0
        %522 = vmatpush1.bf16.msra.mxu0 %v481
        %523 = vmatprep.subr.bf16.mxu0 0
        %524 = vmatpush1.bf16.msra.mxu0 0
        %525 = vmatprep.subr.bf16.mxu0 0
        %526 = vmatpush1.bf16.msra.mxu0 0
        %527 = vmatprep.subr.bf16.mxu0 0
        %528 = vmatpush1.bf16.msra.mxu0 0
        %529 = vmatprep.subr.bf16.mxu0 0
        %530 = vmatpush1.bf16.msra.mxu0 0
        %531 = vmatprep.subr.bf16.mxu0 0
        %532 = vmatpush1.bf16.msra.mxu0 0
        %533 = vmatprep.subr.bf16.mxu0 0
        %534 = vmatpush1.bf16.msra.mxu0 0
        %535 = vmatprep.subr.bf16.mxu0 0
        %536 = vmatpush1.bf16.msra.mxu0 0
        %537 = vmatprep.subr.bf16.mxu0 0
        %538 = vmatpush1.bf16.msra.mxu0 0
        %539 = vmatprep.subr.bf16.mxu0 0
        %540 = vmatpush1.bf16.msra.mxu0 0
        %541 = vmatprep.subr.bf16.mxu0 0
        %542 = vmatpush1.bf16.msra.mxu0 0
        %543 = vmatprep.subr.bf16.mxu0 0
        %544 = vmatpush1.bf16.msra.mxu0 0
        %545 = vmatprep.subr.bf16.mxu0 0
        %546 = vmatpush1.bf16.msra.mxu0 0
        %547 = vmatprep.subr.bf16.mxu0 0
        %548 = vmatpush1.bf16.msra.mxu0 0
        %549 = vmatprep.subr.bf16.mxu0 0
        %550 = vmatpush1.bf16.msra.mxu0 0
        %551 = vmatprep.mubr.bf16.mxu0 0
        %552 = vmatmul.mubr.bf16.gmra.mrb[0].mxu0 %v514
        %v553 = vpop.f32.mrb[0].mxu0
        %v554 = vadd.f32 %v485, %v553
        %v555 = vpop.f32.mrb[0].mxu0
        %v556 = vpop.f32.mrb[0].mxu0
        %v557 = vadd.f32 %v490, %v556
        %v558 = vpop.f32.mrb[0].mxu0
        %559 = vmatprep.mubr.bf16.mxu0 0
        %560 = vmatmul.mubr.bf16.gmra.mrb[0].mxu0 %v517
        %v561 = vpop.f32.mrb[0].mxu0
        %v562 = vadd.f32 %v495, %v561
        %v563 = vpop.f32.mrb[0].mxu0
        %v564 = vpop.f32.mrb[0].mxu0
        %v565 = vadd.f32 %v500, %v564
        %v566 = vpop.f32.mrb[0].mxu0
        %567 = vdwg.mxu0
        %v568 = vmax.f32 %v554, 0.0
        %v569 = vmax.f32 %v557, 0.0
        %v570 = vmax.f32 %v562, 0.0
        %v571 = vmax.f32 %v565, 0.0
        %v572 = vld [vmem:[%s5] sm:$0xf]
        %v573 = vld [vmem:[%s5 + $0x4] sm:$0xf]
        %v574 = vld [vmem:[%s5 + $0x8] sm:$0xf]
        %v575 = vld [vmem:[%s5 + $0xc] sm:$0xf]
        %v576 = vld [vmem:[%s6] sm:$0xff]
        %v577 = vld [vmem:[%s6 + $0x8] sm:$0xff]
        %v578 = vld [vmem:[%s6 + $0x10] sm:$0xff]
        %v579 = vld [vmem:[%s6 + $0x18] sm:$0xff]
        %v580 = vpack.c.bf16 %v569, %v568
        %v581 = vpack.c.bf16 %v571, %v570
        %583 = vset.pattern.permute.xlu0 0
        %584 = vperm.xlu0 %583, %v576
        %v585 = vpop.permute.xlu0 %584
        %588 = vset.pattern.permute.xlu0 0
        %589 = vperm.xlu0 %588, %v577
        %v590 = vpop.permute.xlu0 %589
        %593 = vset.pattern.permute.xlu0 0
        %594 = vperm.xlu0 %593, %v578
        %v595 = vpop.permute.xlu0 %594
        %598 = vset.pattern.permute.xlu0 0
        %599 = vperm.xlu0 %598, %v579
        %v600 = vpop.permute.xlu0 %599
        %v606 = vunpack.c.l.b16 %v572
        %v607 = vunpack.c.l.b16 %v573
        %v608 = vunpack.c.l.b16 %v574
        %v609 = vunpack.c.l.b16 %v575
        %v610 = vpack.c.b16 %v607, %v606
        %v611 = vpack.c.b16 %v609, %v608
        %v613 = vsel %vm512, %v610, 0
        %v616 = vsel %vm512, %v611, 0
        %618 = vmatprep.subr.bf16.mxu0 0
        %619 = vmatpush1.bf16.msra.mxu0 %v580
        %620 = vmatprep.subr.bf16.mxu0 0
        %621 = vmatpush1.bf16.msra.mxu0 %v581
        %622 = vmatprep.subr.bf16.mxu0 0
        %623 = vmatpush1.bf16.msra.mxu0 0
        %624 = vmatprep.subr.bf16.mxu0 0
        %625 = vmatpush1.bf16.msra.mxu0 0
        %626 = vmatprep.subr.bf16.mxu0 0
        %627 = vmatpush1.bf16.msra.mxu0 0
        %628 = vmatprep.subr.bf16.mxu0 0
        %629 = vmatpush1.bf16.msra.mxu0 0
        %630 = vmatprep.subr.bf16.mxu0 0
        %631 = vmatpush1.bf16.msra.mxu0 0
        %632 = vmatprep.subr.bf16.mxu0 0
        %633 = vmatpush1.bf16.msra.mxu0 0
        %634 = vmatprep.subr.bf16.mxu0 0
        %635 = vmatpush1.bf16.msra.mxu0 0
        %636 = vmatprep.subr.bf16.mxu0 0
        %637 = vmatpush1.bf16.msra.mxu0 0
        %638 = vmatprep.subr.bf16.mxu0 0
        %639 = vmatpush1.bf16.msra.mxu0 0
        %640 = vmatprep.subr.bf16.mxu0 0
        %641 = vmatpush1.bf16.msra.mxu0 0
        %642 = vmatprep.subr.bf16.mxu0 0
        %643 = vmatpush1.bf16.msra.mxu0 0
        %644 = vmatprep.subr.bf16.mxu0 0
        %645 = vmatpush1.bf16.msra.mxu0 0
        %646 = vmatprep.subr.bf16.mxu0 0
        %647 = vmatpush1.bf16.msra.mxu0 0
        %648 = vmatprep.subr.bf16.mxu0 0
        %649 = vmatpush1.bf16.msra.mxu0 0
        %650 = vmatprep.mubr.bf16.mxu0 0
        %651 = vmatmul.mubr.bf16.gmra.mrb[0].mxu0 %v613
        %v652 = vpop.f32.mrb[0].mxu0
        %v653 = vadd.f32 %v585, %v652
        %v654 = vpop.f32.mrb[0].mxu0
        %v655 = vpop.f32.mrb[0].mxu0
        %v656 = vadd.f32 %v590, %v655
        %v657 = vpop.f32.mrb[0].mxu0
        %658 = vmatprep.mubr.bf16.mxu0 0
        %659 = vmatmul.mubr.bf16.gmra.mrb[0].mxu0 %v616
        %v660 = vpop.f32.mrb[0].mxu0
        %v661 = vadd.f32 %v595, %v660
        %v662 = vpop.f32.mrb[0].mxu0
        %v663 = vpop.f32.mrb[0].mxu0
        %v664 = vadd.f32 %v600, %v663
        %v665 = vpop.f32.mrb[0].mxu0
        %666 = vdwg.mxu0
        %v667 = vmax.f32 %v653, 0.0
        %v668 = vmax.f32 %v656, 0.0
        %v669 = vmax.f32 %v661, 0.0
        %v670 = vmax.f32 %v664, 0.0
        %v671 = vld [vmem:[%s7] sm:$0x1]
        %v672 = vld [vmem:[#allocation2] sm:$0x1]
        %v673 = vpack.c.bf16 %v668, %v667
        %v674 = vpack.c.bf16 %v670, %v669
        %676 = vset.pattern.permute.xlu0 0
        %677 = vperm.xlu0 %676, %v672
        %v678 = vpop.permute.xlu0 %677
        %v680 = vlaneseq
        %v681 = vshrl.u32 %v680, 7
        %v682 = vsub.s32 0, %v681
        %v683 = vrot.slane %v678, %v682
        %v685 = vsel %vm512, %v671, 0
        %687 = vmatprep.subr.bf16.mxu0 0
        %688 = vmatpush1.bf16.msra.mxu0 %v673
        %689 = vmatprep.subr.bf16.mxu0 0
        %690 = vmatpush1.bf16.msra.mxu0 %v674
        %691 = vmatprep.subr.bf16.mxu0 0
        %692 = vmatpush1.bf16.msra.mxu0 0
        %693 = vmatprep.subr.bf16.mxu0 0
        %694 = vmatpush1.bf16.msra.mxu0 0
        %695 = vmatprep.subr.bf16.mxu0 0
        %696 = vmatpush1.bf16.msra.mxu0 0
        %697 = vmatprep.subr.bf16.mxu0 0
        %698 = vmatpush1.bf16.msra.mxu0 0
        %699 = vmatprep.subr.bf16.mxu0 0
        %700 = vmatpush1.bf16.msra.mxu0 0
        %701 = vmatprep.subr.bf16.mxu0 0
        %702 = vmatpush1.bf16.msra.mxu0 0
        %703 = vmatprep.subr.bf16.mxu0 0
        %704 = vmatpush1.bf16.msra.mxu0 0
        %705 = vmatprep.subr.bf16.mxu0 0
        %706 = vmatpush1.bf16.msra.mxu0 0
        %707 = vmatprep.subr.bf16.mxu0 0
        %708 = vmatpush1.bf16.msra.mxu0 0
        %709 = vmatprep.subr.bf16.mxu0 0
        %710 = vmatpush1.bf16.msra.mxu0 0
        %711 = vmatprep.subr.bf16.mxu0 0
        %712 = vmatpush1.bf16.msra.mxu0 0
        %713 = vmatprep.subr.bf16.mxu0 0
        %714 = vmatpush1.bf16.msra.mxu0 0
        %715 = vmatprep.subr.bf16.mxu0 0
        %716 = vmatpush1.bf16.msra.mxu0 0
        %717 = vmatprep.subr.bf16.mxu0 0
        %718 = vmatpush1.bf16.msra.mxu0 0
        %719 = vmatprep.mubr.bf16.mxu0 0
        %720 = vmatmul.mubr.bf16.gmra.mrb[0].mxu0 %v685
        %v721 = vpop.f32.mrb[0].mxu0
        %v722 = vadd.f32 %v683, %v721
        %v723 = vpop.f32.mrb[0].mxu0
        %v724 = vpop.f32.mrb[0].mxu0
        %v725 = vpop.f32.mrb[0].mxu0
        %726 = vdwg.mxu0
        %727 = vst [vmem:[%s369] sm:$0x1] %v722
        %s728 = sand.u32 %s227, 1
        %s729 = scalar_lea.sflag [#allocation5], %s728
        %s730 = sand.u32 %s227, 1
        %s731 = scalar_lea.vmem [#allocation4], %s730
        // Predicated region
        $region95: #{tpu_custom_call.1} parent=89 // pred_check
          %p732 = pneg %p237
        $region96: #{tpu_custom_call.1} parent=89 // pred_check_branch
          %734 = sbr.rel (%p732) target = $region98
        $region97: #{tpu_custom_call.1} parent=89 // pred_region
          %s736 = ssub.s32 16, 16
          %737 = vsyncadd %s729, %s736
          %s738 = smul.addr %s25, 16
          %s739 = scalar_lea.hbm %s9, %s738
          %s741 = sshll.u32 %s731, 4
          %s742 = int_to_ptr.vmem [resolvable:$true] %s741
          %744 = dma.vmem_to_hbm [thread:$0]  %s742, 16, %s739, %s729
        $region98: #{tpu_custom_call.1} parent=89 // pred_fallthru
          _
      $region90: #{tpu_custom_call.1} parent=5 // pred_fallthru
        _
      %p745 = scmp.le.s32.totalorder 2, %s20
      // Predicated region
      $region99: #{tpu_custom_call.1} parent=5 // pred_check
        %p746 = pneg %p745
      $region100: #{tpu_custom_call.1} parent=5 // pred_check_branch
        %748 = sbr.rel (%p746) target = $region102
      $region101: #{tpu_custom_call.1} parent=5 // pred_region
        %s749 = ssub.s32 %s20, 2
        // Predicated region
        $region103: #{tpu_custom_call.1} parent=101 // pred_check
          %p750 = pneg %p243
        $region104: #{tpu_custom_call.1} parent=101 // pred_check_branch
          %752 = sbr.rel (%p750) target = $region106
        $region105: #{tpu_custom_call.1} parent=101 // pred_region
          %s753 = sand.u32 %s228, 1
          %s754 = scalar_lea.sflag [#allocation5], %s753
          %s755 = sand.u32 %s228, 1
          %s756 = scalar_lea.vmem [#allocation4], %s755
          %757 = dma.done %s754, 16
        $region106: #{tpu_custom_call.1} parent=101 // pred_fallthru
          _
      $region102: #{tpu_custom_call.1} parent=5 // pred_fallthru
        _
    $region6: #{tpu_custom_call.1} parent=1 // loop_footer
      %s24 = sadd.s32 1, %s20
    $region7: #{tpu_custom_call.1} parent=1 // loop_footer_branch
      %19 = sbr.rel target = $region3
    $region8: #{tpu_custom_call.1} parent=1 // loop_exit
      _
    %758 = vsyncpa [#allocation5], 1
    %s759 = scalar_lea.sflag [#allocation5], 1
    %760 = vsyncpa %s759, 1

</llo_original>
